<compile_context>
chip_gen: v7x
topology: tpu7x:2x2x1
jax: 0.10.0
libtpu: 0.0.40
codegen_flags: <defaults>
</compile_context>

<pallas_src>
import functools

import jax
import jax.numpy as jnp
from jax.experimental import pallas as pl
from jax.experimental.pallas import tpu as pltpu


def _shift_lanes_down(a, s):
    """out[:, m] = a[:, m + s]  (== jnp.roll(a, -s, axis=1), written explicitly).

    Wrap-around lanes only land in the padded pool rows/cols, which the wrapper
    slices off, so the wrap never pollutes valid outputs.
    """
    if s == 0:
        return a
    return jnp.concatenate([a[:, s:], a[:, :s]], axis=1)


def _convblock_kernel(x_ref, w_ref, b_ref, o_ref, *, cout, wqp, plane):
    # x_ref: (Cin_p, 4*plane) bf16.  Lane index = p*plane + img*hqp*wqp + hh*wqp + ww,
    #        parity p = rh*2 + rw, holding x[img, ci, 2*hh + rh, 2*ww + rw].
    # w_ref: (9*Cout, Cin_p) bf16, rows ordered (kh, kw, co).
    # b_ref: (Cout, 1) float32.
    # o_ref: (Cout, plane) float32 — pooled + ReLU output on the padded pool grid.

    # One MXU call: per-pixel channel contraction for all 9 taps at once.
    y = jnp.dot(w_ref[...], x_ref[...],
                preferred_element_type=jnp.float32)        # (9*Cout, 4*plane) f32

    def tap(dh, dw, kh, kw):
        # Conv tap (kh,kw) evaluated at pool offset (dh,dw): pick parity plane
        # (rh,rw) = (dh+kh, dw+kw) % 2 and shift it by (qh,qw) = (dh+kh, dw+kw)//2
        # pool-grid pixels, i.e. a lane shift of qh*wqp + qw within the plane.
        sh, sw = dh + kh, dw + kw
        rh, qh = sh % 2, sh // 2
        rw, qw = sw % 2, sw // 2
        t = kh * 3 + kw
        p = rh * 2 + rw
        slab = y[t * cout:(t + 1) * cout, p * plane:(p + 1) * plane]  # aligned
        return _shift_lanes_down(slab, qh * wqp + qw)      # (Cout, plane)

    pooled = None
    for dh in range(2):            # 2x2 max-pool positions
        for dw in range(2):
            conv = None
            for kh in range(3):    # 3x3 conv taps (shift-and-add)
                for kw in range(3):
                    term = tap(dh, dw, kh, kw)
                    conv = term if conv is None else conv + term
            pooled = conv if pooled is None else jnp.maximum(pooled, conv)

    # Bias hoisted past the pool max (max(y+b) == max(y)+b), ReLU folded in.
    # Padded pool rows/cols hold finite garbage; the wrapper slices them off.
    o_ref[...] = jnp.maximum(pooled + b_ref[...], 0.0)


def conv_block_forward(x_nchw, weight_oihw, bias, *, compute_dtype=jnp.bfloat16):
    """ConvBlock.forward: conv3x3(valid) -> maxpool2x2 -> relu.  NCHW in/out."""
    n, cin, h, w = x_nchw.shape
    cout = weight_oihw.shape[0]
    ho, wo = h - 2, w - 2              # conv 'valid' output
    ph, pw = ho // 2, wo // 2          # MaxPool2d(2,2) output (floor, as PyTorch)
    hqp, wqp = ph + 1, pw + 1          # parity-plane extent actually touched
    plane = n * hqp * wqp              # lanes per parity plane (128 at test size)
    cin_p = ((cin + 7) // 8) * 8       # pad contraction dim to a sublane tile

    xc = x_nchw.astype(compute_dtype)
    # 1x parity-split rearrangement (layout plumbing only, no 9x patch tensor):
    # planes[rh*2+rw][img, ci, hh, ww] = x[img, ci, 2*hh + rh, 2*ww + rw]
    planes = [xc[:, :, rh:rh + 2 * hqp:2, rw:rw + 2 * wqp:2]
              for rh in range(2) for rw in range(2)]        # each (n,cin,hqp,wqp)
    xq = jnp.stack(planes, axis=0)                          # (4, n, cin, hqp, wqp)
    xqm = jnp.transpose(xq, (2, 0, 1, 3, 4)).reshape(cin, 4 * plane)
    xqm = jnp.pad(xqm, ((0, cin_p - cin), (0, 0)))          # zero channels

    # wstack[(kh*3+kw)*cout + co, ci] = weight[co, ci, kh, kw]
    wstack = jnp.transpose(weight_oihw, (2, 3, 0, 1)).reshape(9 * cout, cin)
    wstack = jnp.pad(wstack, ((0, 0), (0, cin_p - cin))).astype(compute_dtype)
    b2 = bias.reshape(cout, 1).astype(jnp.float32)

    kernel = functools.partial(_convblock_kernel, cout=cout, wqp=wqp, plane=plane)
    out = pl.pallas_call(
        kernel,
        out_shape=jax.ShapeDtypeStruct((cout, plane), jnp.float32),
        grid=(1,),
        in_specs=[
            pl.BlockSpec((cin_p, 4 * plane), lambda i: (0, 0)),
            pl.BlockSpec((9 * cout, cin_p), lambda i: (0, 0)),
            pl.BlockSpec((cout, 1), lambda i: (0, 0)),
        ],
        out_specs=pl.BlockSpec((cout, plane), lambda i: (0, 0)),
        compiler_params=pltpu.CompilerParams(
            dimension_semantics=("arbitrary",)),
    )(xqm, wstack, b2)

    # Drop the padded pool rows/cols and go back to NCHW (tiny layout plumbing).
    out = out.reshape(cout, n, hqp, wqp)[:, :, :ph, :pw]
    return jnp.transpose(out, (1, 0, 2, 3))


def _reference_forward(x_nchw, weight_oihw, bias, cast_inputs_to=None):
    """Pure-JAX reference matching the PyTorch module."""
    x = x_nchw.astype(jnp.float32)
    w = weight_oihw.astype(jnp.float32)
    if cast_inputs_to is not None:   # mirror the kernel's input rounding
        x = x.astype(cast_inputs_to).astype(jnp.float32)
        w = w.astype(cast_inputs_to).astype(jnp.float32)
    y = jax.lax.conv_general_dilated(
        x, w, window_strides=(1, 1), padding="VALID",
        dimension_numbers=("NCHW", "OIHW", "NCHW"),
        precision=jax.lax.Precision.HIGHEST)
    y = y + bias.reshape(1, -1, 1, 1).astype(jnp.float32)
    y = jax.lax.reduce_window(y, -jnp.inf, jax.lax.max,
                              window_dimensions=(1, 1, 2, 2),
                              window_strides=(1, 1, 2, 2),
                              padding="VALID")
    return jnp.maximum(y, 0.0)


if __name__ == "__main__":
    # Small shapes consistent with the module: batch=2, in_dim=4, out_dim=8, 16x16.
    N, CIN, COUT, H, W = 2, 4, 8, 16, 16

    key = jax.random.PRNGKey(0)
    kx, kw, kb = jax.random.split(key, 3)
    x = jax.random.normal(kx, (N, CIN, H, W), dtype=jnp.float32)
    # Deterministic synthetic parameters (Conv2d(in=4, out=8, k=3) shapes).
    weight = jax.random.normal(kw, (COUT, CIN, 3, 3), dtype=jnp.float32) * 0.1
    bias = jax.random.normal(kb, (COUT,), dtype=jnp.float32) * 0.1

    out = jax.block_until_ready(jax.jit(conv_block_forward)(x, weight, bias))
    ref_mixed = jax.block_until_ready(
        _reference_forward(x, weight, bias, cast_inputs_to=jnp.bfloat16))
    ref_f32 = jax.block_until_ready(_reference_forward(x, weight, bias))

    assert out.shape == (N, COUT, 7, 7), out.shape
    # Tight check vs. a reference with the same bf16 input rounding (kernel
    # accumulates in f32, so these should agree to summation-order noise).
    assert jnp.allclose(out, ref_mixed, atol=1e-4, rtol=1e-4), float(
        jnp.max(jnp.abs(out - ref_mixed)))
    # Looser sanity check vs. the full-f32 PyTorch-equivalent reference.
    assert jnp.allclose(out, ref_f32, atol=5e-2, rtol=5e-2), float(
        jnp.max(jnp.abs(out - ref_f32)))
    print("KERNEL_OK")
</pallas_src>

<mosaic_0001>
module attributes {stable_mosaic.version = 11 : i64} {
  func.func @_convblock_kernel(%arg0: i32, %arg1: memref<8x512xbf16, #tpu.memory_space<vmem>>, %arg2: memref<72x8xbf16, #tpu.memory_space<vmem>>, %arg3: memref<8x1xf32, #tpu.memory_space<vmem>>, %arg4: memref<8x128xf32, #tpu.memory_space<vmem>>) attributes {dimension_semantics = [#tpu.dimension_semantics<arbitrary>], iteration_bounds = array<i64: 1>, scalar_prefetch = 0 : i64, scratch_operands = 0 : i64, tpu.core_type = #tpu.core_type<tc>, window_params = [{pipeline_mode = #tpu.pipeline_mode<synchronous>, transform_indices = @transform_0, window_bounds = array<i64: 8, 512>}, {pipeline_mode = #tpu.pipeline_mode<synchronous>, transform_indices = @transform_1, window_bounds = array<i64: 72, 8>}, {pipeline_mode = #tpu.pipeline_mode<synchronous>, transform_indices = @transform_2, window_bounds = array<i64: 8, 1>}, {pipeline_mode = #tpu.pipeline_mode<synchronous>, transform_indices = @transform_3, window_bounds = array<i64: 8, 128>}]} {
    %c0 = arith.constant 0 : index
    %c0_0 = arith.constant 0 : index
    %0 = vector.load %arg2[%c0, %c0_0] : memref<72x8xbf16, #tpu.memory_space<vmem>>, vector<72x8xbf16>
    %c0_1 = arith.constant 0 : index
    %c0_2 = arith.constant 0 : index
    %1 = vector.load %arg1[%c0_1, %c0_2] : memref<8x512xbf16, #tpu.memory_space<vmem>>, vector<8x512xbf16>
    %cst = arith.constant dense<0.000000e+00> : vector<72x512xf32>
    %2 = tpu.matmul %0, %1, %cst {dimension_numbers = #tpu.dot_dimension_numbers<[1], [0], [0], [1], [0, 0, 1, 1], [], []>} : vector<72x8xbf16>, vector<8x512xbf16>, vector<72x512xf32> -> vector<72x512xf32>
    %3 = vector.extract_strided_slice %2 {offsets = [0, 0], sizes = [8, 128], strides = [1, 1]} : vector<72x512xf32> to vector<8x128xf32>
    %4 = vector.extract_strided_slice %2 {offsets = [8, 128], sizes = [8, 128], strides = [1, 1]} : vector<72x512xf32> to vector<8x128xf32>
    %5 = arith.addf %3, %4 : vector<8x128xf32>
    %6 = vector.extract_strided_slice %2 {offsets = [16, 0], sizes = [8, 128], strides = [1, 1]} : vector<72x512xf32> to vector<8x128xf32>
    %7 = vector.extract_strided_slice %6 {offsets = [0, 1], sizes = [8, 127], strides = [1, 1]} : vector<8x128xf32> to vector<8x127xf32>
    %8 = vector.extract_strided_slice %6 {offsets = [0, 0], sizes = [8, 1], strides = [1, 1]} : vector<8x128xf32> to vector<8x1xf32>
    %9 = tpu.concatenate %7, %8 in 1 : vector<8x127xf32>, vector<8x1xf32> -> vector<8x128xf32>
    %10 = arith.addf %5, %9 : vector<8x128xf32>
    %11 = vector.extract_strided_slice %2 {offsets = [24, 256], sizes = [8, 128], strides = [1, 1]} : vector<72x512xf32> to vector<8x128xf32>
    %12 = arith.addf %10, %11 : vector<8x128xf32>
    %13 = vector.extract_strided_slice %2 {offsets = [32, 384], sizes = [8, 128], strides = [1, 1]} : vector<72x512xf32> to vector<8x128xf32>
    %14 = arith.addf %12, %13 : vector<8x128xf32>
    %15 = vector.extract_strided_slice %2 {offsets = [40, 256], sizes = [8, 128], strides = [1, 1]} : vector<72x512xf32> to vector<8x128xf32>
    %16 = vector.extract_strided_slice %15 {offsets = [0, 1], sizes = [8, 127], strides = [1, 1]} : vector<8x128xf32> to vector<8x127xf32>
    %17 = vector.extract_strided_slice %15 {offsets = [0, 0], sizes = [8, 1], strides = [1, 1]} : vector<8x128xf32> to vector<8x1xf32>
    %18 = tpu.concatenate %16, %17 in 1 : vector<8x127xf32>, vector<8x1xf32> -> vector<8x128xf32>
    %19 = arith.addf %14, %18 : vector<8x128xf32>
    %20 = vector.extract_strided_slice %2 {offsets = [48, 0], sizes = [8, 128], strides = [1, 1]} : vector<72x512xf32> to vector<8x128xf32>
    %21 = vector.extract_strided_slice %20 {offsets = [0, 8], sizes = [8, 120], strides = [1, 1]} : vector<8x128xf32> to vector<8x120xf32>
    %22 = vector.extract_strided_slice %20 {offsets = [0, 0], sizes = [8, 8], strides = [1, 1]} : vector<8x128xf32> to vector<8x8xf32>
    %23 = tpu.concatenate %21, %22 in 1 : vector<8x120xf32>, vector<8x8xf32> -> vector<8x128xf32>
    %24 = arith.addf %19, %23 : vector<8x128xf32>
    %25 = vector.extract_strided_slice %2 {offsets = [56, 128], sizes = [8, 128], strides = [1, 1]} : vector<72x512xf32> to vector<8x128xf32>
    %26 = vector.extract_strided_slice %25 {offsets = [0, 8], sizes = [8, 120], strides = [1, 1]} : vector<8x128xf32> to vector<8x120xf32>
    %27 = vector.extract_strided_slice %25 {offsets = [0, 0], sizes = [8, 8], strides = [1, 1]} : vector<8x128xf32> to vector<8x8xf32>
    %28 = tpu.concatenate %26, %27 in 1 : vector<8x120xf32>, vector<8x8xf32> -> vector<8x128xf32>
    %29 = arith.addf %24, %28 : vector<8x128xf32>
    %30 = vector.extract_strided_slice %2 {offsets = [64, 0], sizes = [8, 128], strides = [1, 1]} : vector<72x512xf32> to vector<8x128xf32>
    %31 = vector.extract_strided_slice %30 {offsets = [0, 9], sizes = [8, 119], strides = [1, 1]} : vector<8x128xf32> to vector<8x119xf32>
    %32 = vector.extract_strided_slice %30 {offsets = [0, 0], sizes = [8, 9], strides = [1, 1]} : vector<8x128xf32> to vector<8x9xf32>
    %33 = tpu.concatenate %31, %32 in 1 : vector<8x119xf32>, vector<8x9xf32> -> vector<8x128xf32>
    %34 = arith.addf %29, %33 : vector<8x128xf32>
    %35 = vector.extract_strided_slice %2 {offsets = [0, 128], sizes = [8, 128], strides = [1, 1]} : vector<72x512xf32> to vector<8x128xf32>
    %36 = vector.extract_strided_slice %2 {offsets = [8, 0], sizes = [8, 128], strides = [1, 1]} : vector<72x512xf32> to vector<8x128xf32>
    %37 = vector.extract_strided_slice %36 {offsets = [0, 1], sizes = [8, 127], strides = [1, 1]} : vector<8x128xf32> to vector<8x127xf32>
    %38 = vector.extract_strided_slice %36 {offsets = [0, 0], sizes = [8, 1], strides = [1, 1]} : vector<8x128xf32> to vector<8x1xf32>
    %39 = tpu.concatenate %37, %38 in 1 : vector<8x127xf32>, vector<8x1xf32> -> vector<8x128xf32>
    %40 = arith.addf %35, %39 : vector<8x128xf32>
    %41 = vector.extract_strided_slice %2 {offsets = [16, 128], sizes = [8, 128], strides = [1, 1]} : vector<72x512xf32> to vector<8x128xf32>
    %42 = vector.extract_strided_slice %41 {offsets = [0, 1], sizes = [8, 127], strides = [1, 1]} : vector<8x128xf32> to vector<8x127xf32>
    %43 = vector.extract_strided_slice %41 {offsets = [0, 0], sizes = [8, 1], strides = [1, 1]} : vector<8x128xf32> to vector<8x1xf32>
    %44 = tpu.concatenate %42, %43 in 1 : vector<8x127xf32>, vector<8x1xf32> -> vector<8x128xf32>
    %45 = arith.addf %40, %44 : vector<8x128xf32>
    %46 = vector.extract_strided_slice %2 {offsets = [24, 384], sizes = [8, 128], strides = [1, 1]} : vector<72x512xf32> to vector<8x128xf32>
    %47 = arith.addf %45, %46 : vector<8x128xf32>
    %48 = vector.extract_strided_slice %2 {offsets = [32, 256], sizes = [8, 128], strides = [1, 1]} : vector<72x512xf32> to vector<8x128xf32>
    %49 = vector.extract_strided_slice %48 {offsets = [0, 1], sizes = [8, 127], strides = [1, 1]} : vector<8x128xf32> to vector<8x127xf32>
    %50 = vector.extract_strided_slice %48 {offsets = [0, 0], sizes = [8, 1], strides = [1, 1]} : vector<8x128xf32> to vector<8x1xf32>
    %51 = tpu.concatenate %49, %50 in 1 : vector<8x127xf32>, vector<8x1xf32> -> vector<8x128xf32>
    %52 = arith.addf %47, %51 : vector<8x128xf32>
    %53 = vector.extract_strided_slice %2 {offsets = [40, 384], sizes = [8, 128], strides = [1, 1]} : vector<72x512xf32> to vector<8x128xf32>
    %54 = vector.extract_strided_slice %53 {offsets = [0, 1], sizes = [8, 127], strides = [1, 1]} : vector<8x128xf32> to vector<8x127xf32>
    %55 = vector.extract_strided_slice %53 {offsets = [0, 0], sizes = [8, 1], strides = [1, 1]} : vector<8x128xf32> to vector<8x1xf32>
    %56 = tpu.concatenate %54, %55 in 1 : vector<8x127xf32>, vector<8x1xf32> -> vector<8x128xf32>
    %57 = arith.addf %52, %56 : vector<8x128xf32>
    %58 = vector.extract_strided_slice %2 {offsets = [48, 128], sizes = [8, 128], strides = [1, 1]} : vector<72x512xf32> to vector<8x128xf32>
    %59 = vector.extract_strided_slice %58 {offsets = [0, 8], sizes = [8, 120], strides = [1, 1]} : vector<8x128xf32> to vector<8x120xf32>
    %60 = vector.extract_strided_slice %58 {offsets = [0, 0], sizes = [8, 8], strides = [1, 1]} : vector<8x128xf32> to vector<8x8xf32>
    %61 = tpu.concatenate %59, %60 in 1 : vector<8x120xf32>, vector<8x8xf32> -> vector<8x128xf32>
    %62 = arith.addf %57, %61 : vector<8x128xf32>
    %63 = vector.extract_strided_slice %2 {offsets = [56, 0], sizes = [8, 128], strides = [1, 1]} : vector<72x512xf32> to vector<8x128xf32>
    %64 = vector.extract_strided_slice %63 {offsets = [0, 9], sizes = [8, 119], strides = [1, 1]} : vector<8x128xf32> to vector<8x119xf32>
    %65 = vector.extract_strided_slice %63 {offsets = [0, 0], sizes = [8, 9], strides = [1, 1]} : vector<8x128xf32> to vector<8x9xf32>
    %66 = tpu.concatenate %64, %65 in 1 : vector<8x119xf32>, vector<8x9xf32> -> vector<8x128xf32>
    %67 = arith.addf %62, %66 : vector<8x128xf32>
    %68 = vector.extract_strided_slice %2 {offsets = [64, 128], sizes = [8, 128], strides = [1, 1]} : vector<72x512xf32> to vector<8x128xf32>
    %69 = vector.extract_strided_slice %68 {offsets = [0, 9], sizes = [8, 119], strides = [1, 1]} : vector<8x128xf32> to vector<8x119xf32>
    %70 = vector.extract_strided_slice %68 {offsets = [0, 0], sizes = [8, 9], strides = [1, 1]} : vector<8x128xf32> to vector<8x9xf32>
    %71 = tpu.concatenate %69, %70 in 1 : vector<8x119xf32>, vector<8x9xf32> -> vector<8x128xf32>
    %72 = arith.addf %67, %71 : vector<8x128xf32>
    %73 = arith.maximumf %34, %72 : vector<8x128xf32>
    %74 = vector.extract_strided_slice %2 {offsets = [0, 256], sizes = [8, 128], strides = [1, 1]} : vector<72x512xf32> to vector<8x128xf32>
    %75 = vector.extract_strided_slice %2 {offsets = [8, 384], sizes = [8, 128], strides = [1, 1]} : vector<72x512xf32> to vector<8x128xf32>
    %76 = arith.addf %74, %75 : vector<8x128xf32>
    %77 = vector.extract_strided_slice %2 {offsets = [16, 256], sizes = [8, 128], strides = [1, 1]} : vector<72x512xf32> to vector<8x128xf32>
    %78 = vector.extract_strided_slice %77 {offsets = [0, 1], sizes = [8, 127], strides = [1, 1]} : vector<8x128xf32> to vector<8x127xf32>
    %79 = vector.extract_strided_slice %77 {offsets = [0, 0], sizes = [8, 1], strides = [1, 1]} : vector<8x128xf32> to vector<8x1xf32>
    %80 = tpu.concatenate %78, %79 in 1 : vector<8x127xf32>, vector<8x1xf32> -> vector<8x128xf32>
    %81 = arith.addf %76, %80 : vector<8x128xf32>
    %82 = vector.extract_strided_slice %2 {offsets = [24, 0], sizes = [8, 128], strides = [1, 1]} : vector<72x512xf32> to vector<8x128xf32>
    %83 = vector.extract_strided_slice %82 {offsets = [0, 8], sizes = [8, 120], strides = [1, 1]} : vector<8x128xf32> to vector<8x120xf32>
    %84 = vector.extract_strided_slice %82 {offsets = [0, 0], sizes = [8, 8], strides = [1, 1]} : vector<8x128xf32> to vector<8x8xf32>
    %85 = tpu.concatenate %83, %84 in 1 : vector<8x120xf32>, vector<8x8xf32> -> vector<8x128xf32>
    %86 = arith.addf %81, %85 : vector<8x128xf32>
    %87 = vector.extract_strided_slice %2 {offsets = [32, 128], sizes = [8, 128], strides = [1, 1]} : vector<72x512xf32> to vector<8x128xf32>
    %88 = vector.extract_strided_slice %87 {offsets = [0, 8], sizes = [8, 120], strides = [1, 1]} : vector<8x128xf32> to vector<8x120xf32>
    %89 = vector.extract_strided_slice %87 {offsets = [0, 0], sizes = [8, 8], strides = [1, 1]} : vector<8x128xf32> to vector<8x8xf32>
    %90 = tpu.concatenate %88, %89 in 1 : vector<8x120xf32>, vector<8x8xf32> -> vector<8x128xf32>
    %91 = arith.addf %86, %90 : vector<8x128xf32>
    %92 = vector.extract_strided_slice %2 {offsets = [40, 0], sizes = [8, 128], strides = [1, 1]} : vector<72x512xf32> to vector<8x128xf32>
    %93 = vector.extract_strided_slice %92 {offsets = [0, 9], sizes = [8, 119], strides = [1, 1]} : vector<8x128xf32> to vector<8x119xf32>
    %94 = vector.extract_strided_slice %92 {offsets = [0, 0], sizes = [8, 9], strides = [1, 1]} : vector<8x128xf32> to vector<8x9xf32>
    %95 = tpu.concatenate %93, %94 in 1 : vector<8x119xf32>, vector<8x9xf32> -> vector<8x128xf32>
    %96 = arith.addf %91, %95 : vector<8x128xf32>
    %97 = vector.extract_strided_slice %2 {offsets = [48, 256], sizes = [8, 128], strides = [1, 1]} : vector<72x512xf32> to vector<8x128xf32>
    %98 = vector.extract_strided_slice %97 {offsets = [0, 8], sizes = [8, 120], strides = [1, 1]} : vector<8x128xf32> to vector<8x120xf32>
    %99 = vector.extract_strided_slice %97 {offsets = [0, 0], sizes = [8, 8], strides = [1, 1]} : vector<8x128xf32> to vector<8x8xf32>
    %100 = tpu.concatenate %98, %99 in 1 : vector<8x120xf32>, vector<8x8xf32> -> vector<8x128xf32>
    %101 = arith.addf %96, %100 : vector<8x128xf32>
    %102 = vector.extract_strided_slice %2 {offsets = [56, 384], sizes = [8, 128], strides = [1, 1]} : vector<72x512xf32> to vector<8x128xf32>
    %103 = vector.extract_strided_slice %102 {offsets = [0, 8], sizes = [8, 120], strides = [1, 1]} : vector<8x128xf32> to vector<8x120xf32>
    %104 = vector.extract_strided_slice %102 {offsets = [0, 0], sizes = [8, 8], strides = [1, 1]} : vector<8x128xf32> to vector<8x8xf32>
    %105 = tpu.concatenate %103, %104 in 1 : vector<8x120xf32>, vector<8x8xf32> -> vector<8x128xf32>
    %106 = arith.addf %101, %105 : vector<8x128xf32>
    %107 = vector.extract_strided_slice %2 {offsets = [64, 256], sizes = [8, 128], strides = [1, 1]} : vector<72x512xf32> to vector<8x128xf32>
    %108 = vector.extract_strided_slice %107 {offsets = [0, 9], sizes = [8, 119], strides = [1, 1]} : vector<8x128xf32> to vector<8x119xf32>
    %109 = vector.extract_strided_slice %107 {offsets = [0, 0], sizes = [8, 9], strides = [1, 1]} : vector<8x128xf32> to vector<8x9xf32>
    %110 = tpu.concatenate %108, %109 in 1 : vector<8x119xf32>, vector<8x9xf32> -> vector<8x128xf32>
    %111 = arith.addf %106, %110 : vector<8x128xf32>
    %112 = arith.maximumf %73, %111 : vector<8x128xf32>
    %113 = vector.extract_strided_slice %2 {offsets = [0, 384], sizes = [8, 128], strides = [1, 1]} : vector<72x512xf32> to vector<8x128xf32>
    %114 = vector.extract_strided_slice %2 {offsets = [8, 256], sizes = [8, 128], strides = [1, 1]} : vector<72x512xf32> to vector<8x128xf32>
    %115 = vector.extract_strided_slice %114 {offsets = [0, 1], sizes = [8, 127], strides = [1, 1]} : vector<8x128xf32> to vector<8x127xf32>
    %116 = vector.extract_strided_slice %114 {offsets = [0, 0], sizes = [8, 1], strides = [1, 1]} : vector<8x128xf32> to vector<8x1xf32>
    %117 = tpu.concatenate %115, %116 in 1 : vector<8x127xf32>, vector<8x1xf32> -> vector<8x128xf32>
    %118 = arith.addf %113, %117 : vector<8x128xf32>
    %119 = vector.extract_strided_slice %2 {offsets = [16, 384], sizes = [8, 128], strides = [1, 1]} : vector<72x512xf32> to vector<8x128xf32>
    %120 = vector.extract_strided_slice %119 {offsets = [0, 1], sizes = [8, 127], strides = [1, 1]} : vector<8x128xf32> to vector<8x127xf32>
    %121 = vector.extract_strided_slice %119 {offsets = [0, 0], sizes = [8, 1], strides = [1, 1]} : vector<8x128xf32> to vector<8x1xf32>
    %122 = tpu.concatenate %120, %121 in 1 : vector<8x127xf32>, vector<8x1xf32> -> vector<8x128xf32>
    %123 = arith.addf %118, %122 : vector<8x128xf32>
    %124 = vector.extract_strided_slice %2 {offsets = [24, 128], sizes = [8, 128], strides = [1, 1]} : vector<72x512xf32> to vector<8x128xf32>
    %125 = vector.extract_strided_slice %124 {offsets = [0, 8], sizes = [8, 120], strides = [1, 1]} : vector<8x128xf32> to vector<8x120xf32>
    %126 = vector.extract_strided_slice %124 {offsets = [0, 0], sizes = [8, 8], strides = [1, 1]} : vector<8x128xf32> to vector<8x8xf32>
    %127 = tpu.concatenate %125, %126 in 1 : vector<8x120xf32>, vector<8x8xf32> -> vector<8x128xf32>
    %128 = arith.addf %123, %127 : vector<8x128xf32>
    %129 = vector.extract_strided_slice %2 {offsets = [32, 0], sizes = [8, 128], strides = [1, 1]} : vector<72x512xf32> to vector<8x128xf32>
    %130 = vector.extract_strided_slice %129 {offsets = [0, 9], sizes = [8, 119], strides = [1, 1]} : vector<8x128xf32> to vector<8x119xf32>
    %131 = vector.extract_strided_slice %129 {offsets = [0, 0], sizes = [8, 9], strides = [1, 1]} : vector<8x128xf32> to vector<8x9xf32>
    %132 = tpu.concatenate %130, %131 in 1 : vector<8x119xf32>, vector<8x9xf32> -> vector<8x128xf32>
    %133 = arith.addf %128, %132 : vector<8x128xf32>
    %134 = vector.extract_strided_slice %2 {offsets = [40, 128], sizes = [8, 128], strides = [1, 1]} : vector<72x512xf32> to vector<8x128xf32>
    %135 = vector.extract_strided_slice %134 {offsets = [0, 9], sizes = [8, 119], strides = [1, 1]} : vector<8x128xf32> to vector<8x119xf32>
    %136 = vector.extract_strided_slice %134 {offsets = [0, 0], sizes = [8, 9], strides = [1, 1]} : vector<8x128xf32> to vector<8x9xf32>
    %137 = tpu.concatenate %135, %136 in 1 : vector<8x119xf32>, vector<8x9xf32> -> vector<8x128xf32>
    %138 = arith.addf %133, %137 : vector<8x128xf32>
    %139 = vector.extract_strided_slice %2 {offsets = [48, 384], sizes = [8, 128], strides = [1, 1]} : vector<72x512xf32> to vector<8x128xf32>
    %140 = vector.extract_strided_slice %139 {offsets = [0, 8], sizes = [8, 120], strides = [1, 1]} : vector<8x128xf32> to vector<8x120xf32>
    %141 = vector.extract_strided_slice %139 {offsets = [0, 0], sizes = [8, 8], strides = [1, 1]} : vector<8x128xf32> to vector<8x8xf32>
    %142 = tpu.concatenate %140, %141 in 1 : vector<8x120xf32>, vector<8x8xf32> -> vector<8x128xf32>
    %143 = arith.addf %138, %142 : vector<8x128xf32>
    %144 = vector.extract_strided_slice %2 {offsets = [56, 256], sizes = [8, 128], strides = [1, 1]} : vector<72x512xf32> to vector<8x128xf32>
    %145 = vector.extract_strided_slice %144 {offsets = [0, 9], sizes = [8, 119], strides = [1, 1]} : vector<8x128xf32> to vector<8x119xf32>
    %146 = vector.extract_strided_slice %144 {offsets = [0, 0], sizes = [8, 9], strides = [1, 1]} : vector<8x128xf32> to vector<8x9xf32>
    %147 = tpu.concatenate %145, %146 in 1 : vector<8x119xf32>, vector<8x9xf32> -> vector<8x128xf32>
    %148 = arith.addf %143, %147 : vector<8x128xf32>
    %149 = vector.extract_strided_slice %2 {offsets = [64, 384], sizes = [8, 128], strides = [1, 1]} : vector<72x512xf32> to vector<8x128xf32>
    %150 = vector.extract_strided_slice %149 {offsets = [0, 9], sizes = [8, 119], strides = [1, 1]} : vector<8x128xf32> to vector<8x119xf32>
    %151 = vector.extract_strided_slice %149 {offsets = [0, 0], sizes = [8, 9], strides = [1, 1]} : vector<8x128xf32> to vector<8x9xf32>
    %152 = tpu.concatenate %150, %151 in 1 : vector<8x119xf32>, vector<8x9xf32> -> vector<8x128xf32>
    %153 = arith.addf %148, %152 : vector<8x128xf32>
    %154 = arith.maximumf %112, %153 : vector<8x128xf32>
    %c0_3 = arith.constant 0 : index
    %c0_4 = arith.constant 0 : index
    %155 = vector.load %arg3[%c0_3, %c0_4] : memref<8x1xf32, #tpu.memory_space<vmem>>, vector<8x1xf32>
    %156 = vector.broadcast %155 : vector<8x1xf32> to vector<8x128xf32>
    %157 = arith.addf %154, %156 : vector<8x128xf32>
    %cst_5 = arith.constant 0.000000e+00 : f32
    %158 = vector.broadcast %cst_5 : f32 to vector<8x128xf32>
    %159 = arith.maximumf %157, %158 : vector<8x128xf32>
    %c0_6 = arith.constant 0 : index
    %c0_7 = arith.constant 0 : index
    %160 = vector.load %arg4[%c0_6, %c0_7] : memref<8x128xf32, #tpu.memory_space<vmem>>, vector<8x128xf32>
    tpu.vector_store %arg4[%c0_6, %c0_7], %159 {strides = array<i32>} : memref<8x128xf32, #tpu.memory_space<vmem>>, vector<8x128xf32>,
    return
  }
  func.func @transform_0(%arg0: i32) -> (i32, i32) {
    %c0_i32 = arith.constant 0 : i32
    %c0_i32_0 = arith.constant 0 : i32
    %c0_i32_1 = arith.constant 0 : i32
    return %c0_i32, %c0_i32_0 : i32, i32
  }
  func.func @transform_1(%arg0: i32) -> (i32, i32) {
    %c0_i32 = arith.constant 0 : i32
    %c0_i32_0 = arith.constant 0 : i32
    %c0_i32_1 = arith.constant 0 : i32
    return %c0_i32, %c0_i32_0 : i32, i32
  }
  func.func @transform_2(%arg0: i32) -> (i32, i32) {
    %c0_i32 = arith.constant 0 : i32
    %c0_i32_0 = arith.constant 0 : i32
    %c0_i32_1 = arith.constant 0 : i32
    return %c0_i32, %c0_i32_0 : i32, i32
  }
  func.func @transform_3(%arg0: i32) -> (i32, i32) {
    %c0_i32 = arith.constant 0 : i32
    %c0_i32_0 = arith.constant 0 : i32
    %c0_i32_1 = arith.constant 0 : i32
    return %c0_i32, %c0_i32_0 : i32, i32
  }
}

</mosaic_0001>

<llo_original>
// kernel: conv_block_forward.1
$region0: #{conv_block_forward.1}
  #allocation0 [shape = 'u32[]', space=smem, size = 0x4, offset = 0x4, fixed_abs, tag = 'smem constant byte address 0x4 - core index']
  #allocation1 [shape = 'u32[144,128]{1,0:T(1,128)}', space=vmem, size = 0x12000, scoped, tag = 'internal scratch']
  %s0 = inlined_call_operand.vmem [shape: bf16[8,512], index: 0, kind: input, shape index: {}]
  %s1 = inlined_call_operand.vmem [shape: bf16[72,8], index: 1, kind: input, shape index: {}]
  %s2 = inlined_call_operand.vmem [shape: f32[8,1], index: 2, kind: input, shape index: {}]
  %s3 = inlined_call_operand.vmem [shape: f32[8,128], index: 3, kind: output, shape index: {}]
  %s4 = sld [smem:[#allocation0]]
  $region22: #{conv_block_forward.1} parent=0
    _
  %s6 = ssub.s32 1, %s4
  %s7 = scalar_select 0, %s6, %s4
  // Predicated region
  $region2: #{conv_block_forward.1} parent=0 // pred_check
    _
  $region3: #{conv_block_forward.1} parent=0 // pred_check_branch
    %9 = sbr.rel (0) target = $region5
  $region4: #{conv_block_forward.1} parent=0 // pred_region
    _
  $region5: #{conv_block_forward.1} parent=0 // pred_fallthru
    _
  // Predicated region
  $region6: #{conv_block_forward.1} parent=0 // pred_check
    _
  $region7: #{conv_block_forward.1} parent=0 // pred_check_branch
    %11 = sbr.rel (0) target = $region9
  $region8: #{conv_block_forward.1} parent=0 // pred_region
    _
  $region9: #{conv_block_forward.1} parent=0 // pred_fallthru
    _
  // Predicated region
  $region10: #{conv_block_forward.1} parent=0 // pred_check
    _
  $region11: #{conv_block_forward.1} parent=0 // pred_check_branch
    %13 = sbr.rel (0) target = $region13
  $region12: #{conv_block_forward.1} parent=0 // pred_region
    _
  $region13: #{conv_block_forward.1} parent=0 // pred_fallthru
    _
  %v15 = vld [vmem:[%s1] sm:$0xf]
  %v16 = vld [vmem:[%s1 + $0x4] sm:$0xf]
  %v17 = vld [vmem:[%s1 + $0x8] sm:$0xf]
  %v18 = vld [vmem:[%s1 + $0xc] sm:$0xf]
  %v19 = vld [vmem:[%s1 + $0x10] sm:$0xf]
  %v20 = vld [vmem:[%s1 + $0x14] sm:$0xf]
  %v21 = vld [vmem:[%s1 + $0x18] sm:$0xf]
  %v22 = vld [vmem:[%s1 + $0x1c] sm:$0xf]
  %v23 = vld [vmem:[%s1 + $0x20] sm:$0xf]
  %v24 = vld [vmem:[%s0] sm:$0xff]
  %v25 = vld [vmem:[%s0 + $0x8] sm:$0xff]
  %v35 = vunpack.c.l.b16 %v15
  %v36 = vunpack.c.l.b16 %v16
  %v37 = vunpack.c.l.b16 %v17
  %v38 = vunpack.c.l.b16 %v18
  %v39 = vunpack.c.l.b16 %v19
  %v40 = vunpack.c.l.b16 %v20
  %v41 = vunpack.c.l.b16 %v21
  %v42 = vunpack.c.l.b16 %v22
  %v43 = vunpack.c.l.b16 %v23
  %v44 = vpack.c.b16 %v36, %v35
  %v45 = vpack.c.b16 %v38, %v37
  %v46 = vpack.c.b16 %v40, %v39
  %v47 = vpack.c.b16 %v42, %v41
  %v48 = vpack.c.b16 %v43, %v43
  %v51 = vunpack.c.l.b16 %v24
  %v52 = vunpack.c.h.b16 %v24
  %v53 = vunpack.c.l.b16 %v25
  %v54 = vunpack.c.h.b16 %v25
  %v55 = vpack.c.b16 %v51, %v51
  %v56 = vpack.c.b16 %v52, %v52
  %v57 = vpack.c.b16 %v53, %v53
  %v58 = vpack.c.b16 %v54, %v54
  %vm59 = vcmask 64512
  %v61 = vsel %vm59, %v44, 0
  %v64 = vsel %vm59, %v45, 0
  %v67 = vsel %vm59, %v46, 0
  %v70 = vsel %vm59, %v47, 0
  %v73 = vsel %vm59, %v48, 0
  %vm75 = vcmask 1043456
  %v77 = vsel %vm75, %v55, 0
  %v80 = vsel %vm75, %v56, 0
  %v83 = vsel %vm75, %v57, 0
  %v86 = vsel %vm75, %v58, 0
  %88 = vmatprep.subr.bf16.mxu0 %v80
  %89 = vmatpush1.bf16.msra.mxu0 %v77
  %90 = vmatprep.subr.bf16.mxu0 0
  %91 = vmatpush1.bf16.msra.mxu0 0
  %92 = vmatprep.subr.bf16.mxu0 0
  %93 = vmatpush1.bf16.msra.mxu0 0
  %94 = vmatprep.subr.bf16.mxu0 0
  %95 = vmatpush1.bf16.msra.mxu0 0
  %96 = vmatprep.subr.bf16.mxu0 0
  %97 = vmatpush1.bf16.msra.mxu0 0
  %98 = vmatprep.subr.bf16.mxu0 0
  %99 = vmatpush1.bf16.msra.mxu0 0
  %100 = vmatprep.subr.bf16.mxu0 0
  %101 = vmatpush1.bf16.msra.mxu0 0
  %102 = vmatprep.subr.bf16.mxu0 0
  %103 = vmatpush1.bf16.msra.mxu0 0
  %104 = vmatprep.subr.bf16.mxu0 0
  %105 = vmatpush1.bf16.msra.mxu0 0
  %106 = vmatprep.subr.bf16.mxu0 0
  %107 = vmatpush1.bf16.msra.mxu0 0
  %108 = vmatprep.subr.bf16.mxu0 0
  %109 = vmatpush1.bf16.msra.mxu0 0
  %110 = vmatprep.subr.bf16.mxu0 0
  %111 = vmatpush1.bf16.msra.mxu0 0
  %112 = vmatprep.subr.bf16.mxu0 0
  %113 = vmatpush1.bf16.msra.mxu0 0
  %114 = vmatprep.subr.bf16.mxu0 0
  %115 = vmatpush1.bf16.msra.mxu0 0
  %116 = vmatprep.subr.bf16.mxu0 0
  %117 = vmatpush1.bf16.msra.mxu0 0
  %118 = vmatprep.subr.bf16.mxu0 0
  %119 = vmatpush1.bf16.msra.mxu0 0
  %120 = vmatprep.mubr.bf16.mxu0 0
  %121 = vmatmul.mubr.bf16.gmra.mrb[0].mxu0 %v61
  %v122 = vpop.f32.mrb[0].mxu0
  %v123 = vadd.f32 0.0, %v122
  %v124 = vpop.f32.mrb[0].mxu0
  %v125 = vadd.f32 0.0, %v124
  %v126 = vpop.f32.mrb[0].mxu0
  %v127 = vadd.f32 0.0, %v126
  %v128 = vpop.f32.mrb[0].mxu0
  %v129 = vadd.f32 0.0, %v128
  %130 = vmatprep.mubr.bf16.mxu0 0
  %131 = vmatmul.mubr.bf16.gmra.mrb[0].mxu0 %v64
  %v132 = vpop.f32.mrb[0].mxu0
  %v133 = vadd.f32 0.0, %v132
  %v134 = vpop.f32.mrb[0].mxu0
  %v135 = vadd.f32 0.0, %v134
  %v136 = vpop.f32.mrb[0].mxu0
  %v137 = vadd.f32 0.0, %v136
  %v138 = vpop.f32.mrb[0].mxu0
  %v139 = vadd.f32 0.0, %v138
  %140 = vmatprep.mubr.bf16.mxu0 0
  %141 = vmatmul.mubr.bf16.gmra.mrb[0].mxu0 %v67
  %v142 = vpop.f32.mrb[0].mxu0
  %v143 = vadd.f32 0.0, %v142
  %v144 = vpop.f32.mrb[0].mxu0
  %v145 = vadd.f32 0.0, %v144
  %v146 = vpop.f32.mrb[0].mxu0
  %v147 = vadd.f32 0.0, %v146
  %v148 = vpop.f32.mrb[0].mxu0
  %v149 = vadd.f32 0.0, %v148
  %150 = vmatprep.mubr.bf16.mxu0 0
  %151 = vmatmul.mubr.bf16.gmra.mrb[0].mxu0 %v70
  %v152 = vpop.f32.mrb[0].mxu0
  %v153 = vadd.f32 0.0, %v152
  %v154 = vpop.f32.mrb[0].mxu0
  %v155 = vadd.f32 0.0, %v154
  %v156 = vpop.f32.mrb[0].mxu0
  %v157 = vadd.f32 0.0, %v156
  %v158 = vpop.f32.mrb[0].mxu0
  %v159 = vadd.f32 0.0, %v158
  %160 = vmatprep.mubr.bf16.mxu0 0
  %161 = vmatmul.mubr.bf16.gmra.mrb[0].mxu0 %v73
  %v162 = vpop.f32.mrb[0].mxu0
  %v163 = vadd.f32 0.0, %v162
  %v164 = vpop.f32.mrb[0].mxu0
  %v165 = vadd.f32 0.0, %v164
  %v166 = vpop.f32.mrb[0].mxu0
  %v167 = vpop.f32.mrb[0].mxu0
  %168 = vdwg.mxu0
  %169 = vmatprep.subr.bf16.mxu0 %v86
  %170 = vmatpush1.bf16.msra.mxu0 %v83
  %171 = vmatprep.subr.bf16.mxu0 0
  %172 = vmatpush1.bf16.msra.mxu0 0
  %173 = vmatprep.subr.bf16.mxu0 0
  %174 = vmatpush1.bf16.msra.mxu0 0
  %175 = vmatprep.subr.bf16.mxu0 0
  %176 = vmatpush1.bf16.msra.mxu0 0
  %177 = vmatprep.subr.bf16.mxu0 0
  %178 = vmatpush1.bf16.msra.mxu0 0
  %179 = vmatprep.subr.bf16.mxu0 0
  %180 = vmatpush1.bf16.msra.mxu0 0
  %181 = vmatprep.subr.bf16.mxu0 0
  %182 = vmatpush1.bf16.msra.mxu0 0
  %183 = vmatprep.subr.bf16.mxu0 0
  %184 = vmatpush1.bf16.msra.mxu0 0
  %185 = vmatprep.subr.bf16.mxu0 0
  %186 = vmatpush1.bf16.msra.mxu0 0
  %187 = vmatprep.subr.bf16.mxu0 0
  %188 = vmatpush1.bf16.msra.mxu0 0
  %189 = vmatprep.subr.bf16.mxu0 0
  %190 = vmatpush1.bf16.msra.mxu0 0
  %191 = vmatprep.subr.bf16.mxu0 0
  %192 = vmatpush1.bf16.msra.mxu0 0
  %193 = vmatprep.subr.bf16.mxu0 0
  %194 = vmatpush1.bf16.msra.mxu0 0
  %195 = vmatprep.subr.bf16.mxu0 0
  %196 = vmatpush1.bf16.msra.mxu0 0
  %197 = vmatprep.subr.bf16.mxu0 0
  %198 = vmatpush1.bf16.msra.mxu0 0
  %199 = vmatprep.subr.bf16.mxu0 0
  %200 = vmatpush1.bf16.msra.mxu0 0
  %201 = vmatprep.mubr.bf16.mxu0 0
  %202 = vmatmul.mubr.bf16.gmra.mrb[0].mxu0 %v61
  %v203 = vpop.f32.mrb[0].mxu0
  %v204 = vadd.f32 0.0, %v203
  %v205 = vpop.f32.mrb[0].mxu0
  %v206 = vadd.f32 0.0, %v205
  %v207 = vpop.f32.mrb[0].mxu0
  %v208 = vadd.f32 0.0, %v207
  %v209 = vpop.f32.mrb[0].mxu0
  %v210 = vadd.f32 0.0, %v209
  %211 = vmatprep.mubr.bf16.mxu0 0
  %212 = vmatmul.mubr.bf16.gmra.mrb[0].mxu0 %v64
  %v213 = vpop.f32.mrb[0].mxu0
  %v214 = vadd.f32 0.0, %v213
  %v215 = vpop.f32.mrb[0].mxu0
  %v216 = vadd.f32 0.0, %v215
  %v217 = vpop.f32.mrb[0].mxu0
  %v218 = vadd.f32 0.0, %v217
  %v219 = vpop.f32.mrb[0].mxu0
  %v220 = vadd.f32 0.0, %v219
  %221 = vmatprep.mubr.bf16.mxu0 0
  %222 = vmatmul.mubr.bf16.gmra.mrb[0].mxu0 %v67
  %v223 = vpop.f32.mrb[0].mxu0
  %v224 = vadd.f32 0.0, %v223
  %v225 = vpop.f32.mrb[0].mxu0
  %v226 = vadd.f32 0.0, %v225
  %v227 = vpop.f32.mrb[0].mxu0
  %v228 = vadd.f32 0.0, %v227
  %v229 = vpop.f32.mrb[0].mxu0
  %v230 = vadd.f32 0.0, %v229
  %231 = vmatprep.mubr.bf16.mxu0 0
  %232 = vmatmul.mubr.bf16.gmra.mrb[0].mxu0 %v70
  %v233 = vpop.f32.mrb[0].mxu0
  %v234 = vadd.f32 0.0, %v233
  %v235 = vpop.f32.mrb[0].mxu0
  %v236 = vadd.f32 0.0, %v235
  %v237 = vpop.f32.mrb[0].mxu0
  %v238 = vadd.f32 0.0, %v237
  %v239 = vpop.f32.mrb[0].mxu0
  %v240 = vadd.f32 0.0, %v239
  %241 = vmatprep.mubr.bf16.mxu0 0
  %242 = vmatmul.mubr.bf16.gmra.mrb[0].mxu0 %v73
  %v243 = vpop.f32.mrb[0].mxu0
  %v244 = vadd.f32 0.0, %v243
  %v245 = vpop.f32.mrb[0].mxu0
  %v246 = vadd.f32 0.0, %v245
  %v247 = vpop.f32.mrb[0].mxu0
  %v248 = vpop.f32.mrb[0].mxu0
  %249 = vdwg.mxu0
  %v250 = vadd.f32 %v123, %v129
  %252 = vrot.lane.b32.xlu0 %v133, 127
  %v253 = vpop.permute.xlu0 %252
  %v255 = vadd.f32 %v250, %v253
  %v256 = vadd.f32 %v255, %v218
  %v257 = vadd.f32 %v256, %v226
  %259 = vrot.lane.b32.xlu0 %v228, 127
  %v260 = vpop.permute.xlu0 %259
  %v262 = vadd.f32 %v257, %v260
  %264 = vrot.lane.b32.xlu0 %v153, 120
  %v265 = vpop.permute.xlu0 %264
  %v267 = vadd.f32 %v262, %v265
  %269 = vrot.lane.b32.xlu0 %v159, 120
  %v270 = vpop.permute.xlu0 %269
  %v272 = vadd.f32 %v267, %v270
  %274 = vrot.lane.b32.xlu0 %v163, 119
  %v275 = vpop.permute.xlu0 %274
  %v277 = vadd.f32 %v272, %v275
  %279 = vrot.lane.b32.xlu0 %v127, 127
  %v280 = vpop.permute.xlu0 %279
  %v282 = vadd.f32 %v125, %v280
  %284 = vrot.lane.b32.xlu0 %v135, 127
  %v285 = vpop.permute.xlu0 %284
  %v287 = vadd.f32 %v282, %v285
  %v288 = vadd.f32 %v287, %v220
  %290 = vrot.lane.b32.xlu0 %v224, 127
  %v291 = vpop.permute.xlu0 %290
  %v293 = vadd.f32 %v288, %v291
  %295 = vrot.lane.b32.xlu0 %v230, 127
  %v296 = vpop.permute.xlu0 %295
  %v298 = vadd.f32 %v293, %v296
  %300 = vrot.lane.b32.xlu0 %v155, 120
  %v301 = vpop.permute.xlu0 %300
  %v303 = vadd.f32 %v298, %v301
  %305 = vrot.lane.b32.xlu0 %v157, 119
  %v306 = vpop.permute.xlu0 %305
  %v308 = vadd.f32 %v303, %v306
  %310 = vrot.lane.b32.xlu0 %v165, 119
  %v311 = vpop.permute.xlu0 %310
  %v313 = vadd.f32 %v308, %v311
  %v314 = vmax.f32 %v277, %v313
  %v315 = vadd.f32 %v204, %v210
  %317 = vrot.lane.b32.xlu0 %v214, 127
  %v318 = vpop.permute.xlu0 %317
  %v320 = vadd.f32 %v315, %v318
  %322 = vrot.lane.b32.xlu0 %v137, 120
  %v323 = vpop.permute.xlu0 %322
  %v325 = vadd.f32 %v320, %v323
  %327 = vrot.lane.b32.xlu0 %v145, 120
  %v328 = vpop.permute.xlu0 %327
  %v330 = vadd.f32 %v325, %v328
  %332 = vrot.lane.b32.xlu0 %v147, 119
  %v333 = vpop.permute.xlu0 %332
  %v335 = vadd.f32 %v330, %v333
  %337 = vrot.lane.b32.xlu0 %v234, 120
  %v338 = vpop.permute.xlu0 %337
  %v340 = vadd.f32 %v335, %v338
  %342 = vrot.lane.b32.xlu0 %v240, 120
  %v343 = vpop.permute.xlu0 %342
  %v345 = vadd.f32 %v340, %v343
  %347 = vrot.lane.b32.xlu0 %v244, 119
  %v348 = vpop.permute.xlu0 %347
  %v350 = vadd.f32 %v345, %v348
  %v351 = vmax.f32 %v314, %v350
  %353 = vrot.lane.b32.xlu0 %v208, 127
  %v354 = vpop.permute.xlu0 %353
  %v356 = vadd.f32 %v206, %v354
  %358 = vrot.lane.b32.xlu0 %v216, 127
  %v359 = vpop.permute.xlu0 %358
  %v361 = vadd.f32 %v356, %v359
  %363 = vrot.lane.b32.xlu0 %v139, 120
  %v364 = vpop.permute.xlu0 %363
  %v366 = vadd.f32 %v361, %v364
  %368 = vrot.lane.b32.xlu0 %v143, 119
  %v369 = vpop.permute.xlu0 %368
  %v371 = vadd.f32 %v366, %v369
  %373 = vrot.lane.b32.xlu0 %v149, 119
  %v374 = vpop.permute.xlu0 %373
  %v376 = vadd.f32 %v371, %v374
  %378 = vrot.lane.b32.xlu0 %v236, 120
  %v379 = vpop.permute.xlu0 %378
  %v381 = vadd.f32 %v376, %v379
  %383 = vrot.lane.b32.xlu0 %v238, 119
  %v384 = vpop.permute.xlu0 %383
  %v386 = vadd.f32 %v381, %v384
  %388 = vrot.lane.b32.xlu0 %v246, 119
  %v389 = vpop.permute.xlu0 %388
  %v391 = vadd.f32 %v386, %v389
  %v392 = vmax.f32 %v351, %v391
  %v393 = vld [vmem:[%s2] sm:$0xff]
  %395 = vset.pattern.permute.xlu0 0
  %396 = vperm.xlu0 %395, %v393
  %v397 = vpop.permute.xlu0 %396
  %v399 = vadd.f32 %v392, %v397
  %v400 = vmax.f32 %v399, 0.0
  %401 = vst [vmem:[%s3] sm:$0xff] %v400
  // Predicated region
  $region14: #{conv_block_forward.1} parent=0 // pred_check
    _
  $region15: #{conv_block_forward.1} parent=0 // pred_check_branch
    %403 = sbr.rel (0) target = $region17
  $region16: #{conv_block_forward.1} parent=0 // pred_region
    _
  $region17: #{conv_block_forward.1} parent=0 // pred_fallthru
    _
  // Predicated region
  $region18: #{conv_block_forward.1} parent=0 // pred_check
    _
  $region19: #{conv_block_forward.1} parent=0 // pred_check_branch
    %405 = sbr.rel (0) target = $region21
  $region20: #{conv_block_forward.1} parent=0 // pred_region
    _
  $region21: #{conv_block_forward.1} parent=0 // pred_fallthru
    _

</llo_original>
